<compile_context>
chip_gen: v7x
topology: tpu7x:2x2x1
jax: 0.10.0
libtpu: 0.0.40
codegen_flags: <defaults>
</compile_context>

<pallas_src>
import functools

import numpy as np
import jax
import jax.numpy as jnp
from jax import lax
from jax.experimental import pallas as pl
from jax.experimental.pallas import tpu as pltpu


def _round_up(x, n):
    return ((x + n - 1) // n) * n


def _vmem_capacity_bytes():
    """Per-core VMEM capacity; conservative 64 MiB (v7x) fallback."""
    try:
        info = pltpu.get_tpu_info()
        cap = getattr(info, "vmem_capacity_bytes", None)
        if cap:
            return int(cap)
    except Exception:
        pass
    return 64 * 1024 * 1024


def _elastic_arcface_kernel(emb_ref, w_ref, invwn_ref, label_ref, side_ref,
                            out_ref, *, s):
    # Raw (un-normalized, possibly bf16) operands go straight to the MXU with
    # an f32 accumulator; the L2 norms are folded in afterwards as a rank-1
    # row/column scale of the [tb, tc] tile.
    cos_theta = jnp.dot(emb_ref[...], w_ref[...],
                        preferred_element_type=jnp.float32)          # [tb, tc]

    side = side_ref[...]               # [tb, 3] = (inv_emb_norm, cos m, sin m)
    inv_en = side[:, 0:1]
    cos_m = side[:, 1:2]
    sin_m = side[:, 2:3]

    cos_theta = cos_theta * inv_en * invwn_ref[...]   # row scale * column scale
    cos_theta = jnp.clip(cos_theta, -1.0, 1.0)

    tb, tc = cos_theta.shape
    label = label_ref[...]             # [tb, 1] int32, -1 == ignore
    # Step-invariant local iota; shift the (tiny) label column instead of the
    # full [tb, tc] iota each grid step.
    label_local = label - pl.program_id(0) * tc                      # [tb, 1]
    col = lax.broadcasted_iota(jnp.int32, (tb, tc), 1)
    target = (col == label_local) & (label != -1)                    # [tb, tc]

    # Margin math only on the (at most one) target cosine per row:
    #   cos(acos(c) + m) = c*cos(m) - sqrt(1 - c^2)*sin(m)
    c_t = jnp.sum(jnp.where(target, cos_theta, 0.0), axis=-1, keepdims=True)
    sin_t = jnp.sqrt(jnp.maximum(1.0 - c_t * c_t, 0.0))
    with_margin = c_t * cos_m - sin_t * sin_m                        # [tb, 1]

    out_ref[...] = jnp.where(target, with_margin, cos_theta) * s


def elastic_arcface(embeddings, label, weight, margin, *, s=64.0,
                    mxu_dtype=jnp.bfloat16, tb_max=256, tc_max=4096):
    """embeddings: [B, D], label: [B] i32 (-1 == ignore),
    weight: [D, C], margin: [B, 1] f32 per-sample elastic margin."""
    B, D = embeddings.shape
    D2, C = weight.shape
    assert D == D2

    embeddings = jnp.asarray(embeddings, jnp.float32)
    weight = jnp.asarray(weight, jnp.float32)
    margin = jnp.asarray(margin, jnp.float32).reshape(B, 1)
    label = jnp.asarray(label, jnp.int32).reshape(B)

    # Hoisted normalization factors (computed once, in f32).
    eps = 1e-12
    inv_en = lax.rsqrt(jnp.sum(embeddings * embeddings, axis=1,
                               keepdims=True) + eps)                 # [B, 1]
    inv_wn = lax.rsqrt(jnp.sum(weight * weight, axis=0,
                               keepdims=True) + eps)                 # [1, C]
    side = jnp.concatenate([inv_en, jnp.cos(margin), jnp.sin(margin)],
                           axis=1)                                   # [B, 3]

    # MXU operands at reduced width (halves weight/embedding HBM traffic and
    # runs bf16-native on v6e/v7x MXUs). Norms/margins stay f32.
    emb_mxu = embeddings.astype(mxu_dtype)
    w_mxu = weight.astype(mxu_dtype)
    emb_bytes = jnp.dtype(mxu_dtype).itemsize

    # --- per-generation tile sizing -----------------------------------------
    vmem_cap = _vmem_capacity_bytes()
    budget = int(0.40 * vmem_cap)              # keep double-buffering intact

    sub = 8 if emb_bytes >= 4 else 16          # sublane pack for the MXU dtype
    tb = min(tb_max, _round_up(B, sub))
    tb = _round_up(tb, sub)

    # Double-buffered bytes that scale with tc (weight slab + f32 out + inv_wn)
    per_tc = 2 * D * emb_bytes + 2 * tb * 4 + 2 * 8 * 4
    # Fixed double-buffered bytes (embeddings tile + lane-padded label/side).
    fixed = 2 * tb * D * emb_bytes + 2 * 2 * tb * 128 * 4
    tc_fit = max((budget - fixed) // max(per_tc, 1), 128)
    tc = min(max(tc_max, 128), _round_up(C, 128), (tc_fit // 128) * 128)
    tc = max((tc // 128) * 128, 128)           # lane-dense output stores

    B_pad = _round_up(B, tb)
    C_pad = _round_up(C, tc)

    if B_pad != B:
        pad_b = B_pad - B
        emb_mxu = jnp.pad(emb_mxu, ((0, pad_b), (0, 0)))
        side = jnp.pad(side, ((0, pad_b), (0, 0)))
        label = jnp.pad(label, (0, pad_b), constant_values=-1)
    if C_pad != C:
        pad_c = C_pad - C
        w_mxu = jnp.pad(w_mxu, ((0, 0), (0, pad_c)))
        inv_wn = jnp.pad(inv_wn, ((0, 0), (0, pad_c)))
    label2 = label.reshape(B_pad, 1)

    # B is the innermost (fastest-varying) grid axis -> the (D, tc) weight slab
    # keeps the same block index across all batch tiles and is not re-DMAed
    # until the column slab changes. C axis is the "parallel" one so a v7x
    # core split lands on disjoint weight slabs.
    grid = (C_pad // tc, B_pad // tb)

    # Exact double-buffered footprint + 25% headroom (capped by capacity).
    footprint = (2 * tb * D * emb_bytes        # embeddings tile
                 + 2 * D * tc * emb_bytes      # weight slab
                 + 2 * 8 * tc * 4              # inv_wn (sublane-padded)
                 + 2 * 2 * tb * 128 * 4        # label + side (lane-padded)
                 + 2 * tb * tc * 4)            # f32 output tile
    vmem_limit = max(int(footprint * 1.25) + (1 << 20), 16 << 20)
    vmem_limit = int(min(vmem_limit, int(0.9 * vmem_cap)))

    out = pl.pallas_call(
        functools.partial(_elastic_arcface_kernel, s=s),
        out_shape=jax.ShapeDtypeStruct((B_pad, C_pad), jnp.float32),
        grid=grid,
        in_specs=[
            pl.BlockSpec((tb, D), lambda c, b: (b, 0)),    # embeddings tile
            pl.BlockSpec((D, tc), lambda c, b: (0, c)),    # weight slab
            pl.BlockSpec((1, tc), lambda c, b: (0, c)),    # inv weight col norms
            pl.BlockSpec((tb, 1), lambda c, b: (b, 0)),    # labels
            pl.BlockSpec((tb, 3), lambda c, b: (b, 0)),    # inv_en, cos m, sin m
        ],
        out_specs=pl.BlockSpec((tb, tc), lambda c, b: (b, c)),
        compiler_params=pltpu.CompilerParams(
            dimension_semantics=("parallel", "arbitrary"),
            vmem_limit_bytes=vmem_limit),
    )(emb_mxu, w_mxu, inv_wn, label2, side)

    return out[:B, :C]


def _reference(embeddings, label, weight, margin, s=64.0):
    emb_n = embeddings / jnp.linalg.norm(embeddings, axis=1, keepdims=True)
    w_n = weight / jnp.linalg.norm(weight, axis=0, keepdims=True)
    cos_theta = jnp.clip(emb_n @ w_n, -1.0, 1.0)
    theta = jnp.arccos(cos_theta)
    B, C = cos_theta.shape
    col = jnp.arange(C)[None, :]
    lbl = label.reshape(B, 1)
    m_hot = jnp.where((col == lbl) & (lbl != -1), margin, 0.0)
    return jnp.cos(theta + m_hot) * s


if __name__ == "__main__":
    s_scale, m_mean, m_std = 64.0, 0.5, 0.0125

    # --- test 1: module-default-ish small shapes, f32 MXU (tight check) -----
    B, D, C = 8, 32, 128
    k_emb, k_w, k_lbl, k_margin = jax.random.split(jax.random.PRNGKey(0), 4)
    embeddings = jax.random.normal(k_emb, (B, D), dtype=jnp.float32)
    weight = 0.01 * jax.random.normal(k_w, (D, C), dtype=jnp.float32)  # std=0.01 init
    label = jax.random.randint(k_lbl, (B,), 0, C, dtype=jnp.int32)
    label = label.at[3].set(-1)  # one "ignored" sample, like torch label == -1
    margin = m_mean + m_std * jax.random.normal(k_margin, (B, 1), dtype=jnp.float32)

    out = elastic_arcface(embeddings, label, weight, margin, s=s_scale,
                          mxu_dtype=jnp.float32)
    out = jax.block_until_ready(out)
    ref = _reference(embeddings, label, weight, margin, s=s_scale)
    np.testing.assert_allclose(np.asarray(out), np.asarray(ref),
                               rtol=1e-4, atol=1e-4)

    # --- test 2: C-tiling (3 column slabs) + batch padding, f32 MXU ---------
    B2, D2, C2 = 12, 32, 384
    k_emb2, k_w2, k_lbl2, k_m2 = jax.random.split(jax.random.PRNGKey(0), 4)
    embeddings2 = jax.random.normal(k_emb2, (B2, D2), dtype=jnp.float32)
    weight2 = 0.01 * jax.random.normal(k_w2, (D2, C2), dtype=jnp.float32)
    label2 = jax.random.randint(k_lbl2, (B2,), 0, C2, dtype=jnp.int32)
    label2 = label2.at[0].set(-1)
    margin2 = m_mean + m_std * jax.random.normal(k_m2, (B2, 1), dtype=jnp.float32)

    out2 = elastic_arcface(embeddings2, label2, weight2, margin2,
                           s=s_scale, mxu_dtype=jnp.float32, tc_max=128)
    out2 = jax.block_until_ready(out2)
    ref2 = _reference(embeddings2, label2, weight2, margin2, s=s_scale)
    np.testing.assert_allclose(np.asarray(out2), np.asarray(ref2),
                               rtol=1e-4, atol=1e-4)

    # --- test 3: default bf16 MXU path, multiple batch tiles + column slabs -
    B3, D3, C3 = 40, 32, 256
    k_emb3, k_w3, k_lbl3, k_m3 = jax.random.split(jax.random.PRNGKey(0), 4)
    embeddings3 = jax.random.normal(k_emb3, (B3, D3), dtype=jnp.float32)
    weight3 = 0.01 * jax.random.normal(k_w3, (D3, C3), dtype=jnp.float32)
    label3 = jax.random.randint(k_lbl3, (B3,), 0, C3, dtype=jnp.int32)
    label3 = label3.at[5].set(-1)
    margin3 = m_mean + m_std * jax.random.normal(k_m3, (B3, 1), dtype=jnp.float32)

    out3 = elastic_arcface(embeddings3, label3, weight3, margin3,
                           s=s_scale, tb_max=16, tc_max=128)   # bf16 default
    out3 = jax.block_until_ready(out3)
    ref3 = _reference(embeddings3, label3, weight3, margin3, s=s_scale)
    # bf16 operands at |logit| up to ~s -> loosened absolute tolerance.
    np.testing.assert_allclose(np.asarray(out3), np.asarray(ref3),
                               rtol=2e-2, atol=0.5)

    print("KERNEL_OK")
</pallas_src>

<mosaic_0001>
module attributes {stable_mosaic.version = 11 : i64} {
  func.func @_elastic_arcface_kernel(%arg0: i32, %arg1: i32, %arg2: memref<8x32xf32, #tpu.memory_space<vmem>>, %arg3: memref<32x128xf32, #tpu.memory_space<vmem>>, %arg4: memref<1x128xf32, #tpu.memory_space<vmem>>, %arg5: memref<8x1xi32, #tpu.memory_space<vmem>>, %arg6: memref<8x3xf32, #tpu.memory_space<vmem>>, %arg7: memref<8x128xf32, #tpu.memory_space<vmem>>) attributes {dimension_semantics = [#tpu.dimension_semantics<parallel>, #tpu.dimension_semantics<arbitrary>], iteration_bounds = array<i64: 1, 1>, scalar_prefetch = 0 : i64, scratch_operands = 0 : i64, tpu.core_type = #tpu.core_type<tc>, window_params = [{transform_indices = @transform_0, window_bounds = array<i64: 8, 32>}, {transform_indices = @transform_1, window_bounds = array<i64: 32, 128>}, {transform_indices = @transform_2, window_bounds = array<i64: 1, 128>}, {transform_indices = @transform_3, window_bounds = array<i64: 8, 1>}, {transform_indices = @transform_4, window_bounds = array<i64: 8, 3>}, {transform_indices = @transform_5, window_bounds = array<i64: 8, 128>}]} {
    %c0 = arith.constant 0 : index
    %c0_0 = arith.constant 0 : index
    %0 = vector.load %arg2[%c0, %c0_0] : memref<8x32xf32, #tpu.memory_space<vmem>>, vector<8x32xf32>
    %c0_1 = arith.constant 0 : index
    %c0_2 = arith.constant 0 : index
    %1 = vector.load %arg3[%c0_1, %c0_2] : memref<32x128xf32, #tpu.memory_space<vmem>>, vector<32x128xf32>
    %cst = arith.constant dense<0.000000e+00> : vector<8x128xf32>
    %2 = tpu.matmul %0, %1, %cst {dimension_numbers = #tpu.dot_dimension_numbers<[1], [0], [0], [1], [0, 0, 1, 1], [], []>} : vector<8x32xf32>, vector<32x128xf32>, vector<8x128xf32> -> vector<8x128xf32>
    %c0_3 = arith.constant 0 : index
    %c0_4 = arith.constant 0 : index
    %3 = vector.load %arg6[%c0_3, %c0_4] : memref<8x3xf32, #tpu.memory_space<vmem>>, vector<8x3xf32>
    %4 = vector.extract_strided_slice %3 {offsets = [0, 0], sizes = [8, 1], strides = [1, 1]} : vector<8x3xf32> to vector<8x1xf32>
    %5 = vector.extract_strided_slice %3 {offsets = [0, 1], sizes = [8, 1], strides = [1, 1]} : vector<8x3xf32> to vector<8x1xf32>
    %6 = vector.extract_strided_slice %3 {offsets = [0, 2], sizes = [8, 1], strides = [1, 1]} : vector<8x3xf32> to vector<8x1xf32>
    %7 = vector.broadcast %4 : vector<8x1xf32> to vector<8x128xf32>
    %8 = arith.mulf %2, %7 : vector<8x128xf32>
    %c0_5 = arith.constant 0 : index
    %c0_6 = arith.constant 0 : index
    %9 = vector.load %arg4[%c0_5, %c0_6] : memref<1x128xf32, #tpu.memory_space<vmem>>, vector<1x128xf32>
    %10 = vector.broadcast %9 : vector<1x128xf32> to vector<8x128xf32>
    %11 = arith.mulf %8, %10 : vector<8x128xf32>
    %cst_7 = arith.constant -1.000000e+00 : f32
    %cst_8 = arith.constant 1.000000e+00 : f32
    %12 = vector.broadcast %cst_7 : f32 to vector<8x128xf32>
    %13 = arith.maximumf %12, %11 : vector<8x128xf32>
    %14 = vector.broadcast %cst_8 : f32 to vector<8x128xf32>
    %15 = arith.minimumf %14, %13 : vector<8x128xf32>
    %c0_9 = arith.constant 0 : index
    %c0_10 = arith.constant 0 : index
    %16 = vector.load %arg5[%c0_9, %c0_10] : memref<8x1xi32, #tpu.memory_space<vmem>>, vector<8x1xi32>
    %c128_i32 = arith.constant 128 : i32
    %17 = arith.muli %arg0, %c128_i32 : i32
    %18 = vector.broadcast %17 : i32 to vector<8x1xi32>
    %19 = arith.subi %16, %18 : vector<8x1xi32>
    %20 = tpu.iota {dimensions = array<i32: 1>} : vector<8x128xi32>
    %21 = vector.broadcast %19 : vector<8x1xi32> to vector<8x128xi32>
    %22 = arith.cmpi eq, %20, %21 : vector<8x128xi32>
    %c-1_i32 = arith.constant -1 : i32
    %23 = vector.broadcast %c-1_i32 : i32 to vector<8x1xi32>
    %24 = arith.cmpi ne, %16, %23 : vector<8x1xi32>
    %25 = vector.broadcast %24 : vector<8x1xi1> to vector<8x128xi1>
    %26 = arith.andi %22, %25 : vector<8x128xi1>
    %cst_11 = arith.constant 0.000000e+00 : f32
    %27 = vector.broadcast %cst_11 : f32 to vector<8x128xf32>
    %28 = arith.select %26, %15, %27 : vector<8x128xi1>, vector<8x128xf32>
    %cst_12 = arith.constant dense<0.000000e+00> : vector<8xf32>
    %29 = vector.multi_reduction <add>, %28, %cst_12 [1] : vector<8x128xf32> to vector<8xf32>
    %30 = vector.shape_cast %29 : vector<8xf32> to vector<8x1xf32>
    %31 = arith.mulf %30, %30 : vector<8x1xf32>
    %cst_13 = arith.constant 1.000000e+00 : f32
    %32 = vector.broadcast %cst_13 : f32 to vector<8x1xf32>
    %33 = arith.subf %32, %31 : vector<8x1xf32>
    %cst_14 = arith.constant 0.000000e+00 : f32
    %34 = vector.broadcast %cst_14 : f32 to vector<8x1xf32>
    %35 = arith.maximumf %33, %34 : vector<8x1xf32>
    %36 = math.sqrt %35 : vector<8x1xf32>
    %37 = arith.mulf %30, %5 : vector<8x1xf32>
    %38 = arith.mulf %36, %6 : vector<8x1xf32>
    %39 = arith.subf %37, %38 : vector<8x1xf32>
    %40 = vector.shape_cast %39 : vector<8x1xf32> to vector<8x1xf32>
    %41 = vector.broadcast %40 : vector<8x1xf32> to vector<8x128xf32>
    %42 = arith.select %26, %41, %15 : vector<8x128xi1>, vector<8x128xf32>
    %cst_15 = arith.constant 6.400000e+01 : f32
    %43 = vector.broadcast %cst_15 : f32 to vector<8x128xf32>
    %44 = arith.mulf %42, %43 : vector<8x128xf32>
    %c0_16 = arith.constant 0 : index
    %c0_17 = arith.constant 0 : index
    %45 = vector.load %arg7[%c0_16, %c0_17] : memref<8x128xf32, #tpu.memory_space<vmem>>, vector<8x128xf32>
    tpu.vector_store %arg7[%c0_16, %c0_17], %44 {strides = array<i32>} : memref<8x128xf32, #tpu.memory_space<vmem>>, vector<8x128xf32>,
    return
  }
  func.func @transform_0(%arg0: i32, %arg1: i32) -> (i32, i32) {
    %c0_i32 = arith.constant 0 : i32
    %c0_i32_0 = arith.constant 0 : i32
    return %arg1, %c0_i32 : i32, i32
  }
  func.func @transform_1(%arg0: i32, %arg1: i32) -> (i32, i32) {
    %c0_i32 = arith.constant 0 : i32
    %c0_i32_0 = arith.constant 0 : i32
    return %c0_i32, %arg0 : i32, i32
  }
  func.func @transform_2(%arg0: i32, %arg1: i32) -> (i32, i32) {
    %c0_i32 = arith.constant 0 : i32
    %c0_i32_0 = arith.constant 0 : i32
    return %c0_i32, %arg0 : i32, i32
  }
  func.func @transform_3(%arg0: i32, %arg1: i32) -> (i32, i32) {
    %c0_i32 = arith.constant 0 : i32
    %c0_i32_0 = arith.constant 0 : i32
    return %arg1, %c0_i32 : i32, i32
  }
  func.func @transform_4(%arg0: i32, %arg1: i32) -> (i32, i32) {
    %c0_i32 = arith.constant 0 : i32
    %c0_i32_0 = arith.constant 0 : i32
    return %arg1, %c0_i32 : i32, i32
  }
  func.func @transform_5(%arg0: i32, %arg1: i32) -> (i32, i32) {
    %c0_i32 = arith.constant 0 : i32
    return %arg1, %arg0 : i32, i32
  }
}

</mosaic_0001>

<llo_original>
// kernel: tpu_custom_call.1
$region0: #{tpu_custom_call.1}
  #allocation0 [shape = 'u32[]', space=smem, size = 0x4, offset = 0x4, fixed_abs, tag = 'smem constant byte address 0x4 - core index']
  #allocation1 [shape = 'u32[144,128]{1,0:T(1,128)}', space=vmem, size = 0x12000, scoped, tag = 'internal scratch']
  %s0 = inlined_call_operand.vmem [shape: f32[8,32], index: 0, kind: input, shape index: {}]
  %s1 = inlined_call_operand.hbm [shape: f32[32,128], index: 1, kind: input, shape index: {}]
  %s2 = inlined_call_operand.vmem [shape: f32[1,128], index: 2, kind: input, shape index: {}]
  %s3 = inlined_call_operand.vmem [shape: s32[8,1], index: 3, kind: input, shape index: {}]
  %s4 = inlined_call_operand.vmem [shape: f32[8,3], index: 4, kind: input, shape index: {}]
  %s5 = inlined_call_operand.hbm [shape: f32[8,128], index: 5, kind: output, shape index: {}]
  %s6 = sld [smem:[#allocation0]]
  $region34: #{tpu_custom_call.1} parent=0
    _
  %s8 = ssub.s32 1, %s6
  %s9 = scalar_select 0, %s8, %s6
  $region1: #{tpu_custom_call.1} parent=0
    #allocation2 [shape = 'u8[16384]{0}', space=vmem, size = 0x4000, scoped, tag = 'input window, operand 1, single buffered']
    #allocation3 [shape = 's32[1]{0}', space=sflag, size = 0x4, scoped, tag = 'scoped memory for tpu_custom_call.1']
    #allocation4 [shape = 's32[1]{0}', space=sflag, size = 0x4, scoped, tag = 'scoped memory for tpu_custom_call.1']
    #allocation5 [shape = 'u8[4096]{0}', space=vmem, size = 0x1000, scoped, tag = 'output window, operand 0, single buffered']
    %10 = vsyncpa [#allocation3], 0
    %11 = vsyncpa [#allocation4], 0
    // Predicated region
    $region2: #{tpu_custom_call.1} parent=1 // pred_check
      _
    $region3: #{tpu_custom_call.1} parent=1 // pred_check_branch
      %13 = sbr.rel (0) target = $region5
    $region4: #{tpu_custom_call.1} parent=1 // pred_region
      _
    $region5: #{tpu_custom_call.1} parent=1 // pred_fallthru
      _
    // Predicated region
    $region6: #{tpu_custom_call.1} parent=1 // pred_check
      _
    $region7: #{tpu_custom_call.1} parent=1 // pred_check_branch
      %15 = sbr.rel (0) target = $region9
    $region8: #{tpu_custom_call.1} parent=1 // pred_region
      %s17 = ssub.s32 512, 512
      %18 = vsyncadd [#allocation3], %s17
      %s19 = sshll.u32 [#allocation2], 4
      %s20 = int_to_ptr.vmem [resolvable:$true] %s19
      %25 = dma.hbm_to_vmem [thread:$0]  %s1, 512, %s20, [#allocation3], 128, 128, 8
    $region9: #{tpu_custom_call.1} parent=1 // pred_fallthru
      _
    // Predicated region
    $region10: #{tpu_custom_call.1} parent=1 // pred_check
      _
    $region11: #{tpu_custom_call.1} parent=1 // pred_check_branch
      %27 = sbr.rel (0) target = $region13
    $region12: #{tpu_custom_call.1} parent=1 // pred_region
      _
    $region13: #{tpu_custom_call.1} parent=1 // pred_fallthru
      _
    // Predicated region
    $region14: #{tpu_custom_call.1} parent=1 // pred_check
      _
    $region15: #{tpu_custom_call.1} parent=1 // pred_check_branch
      %29 = sbr.rel (0) target = $region17
    $region16: #{tpu_custom_call.1} parent=1 // pred_region
      _
    $region17: #{tpu_custom_call.1} parent=1 // pred_fallthru
      _
    // Predicated region
    $region18: #{tpu_custom_call.1} parent=1 // pred_check
      _
    $region19: #{tpu_custom_call.1} parent=1 // pred_check_branch
      %31 = sbr.rel (0) target = $region21
    $region20: #{tpu_custom_call.1} parent=1 // pred_region
      _
    $region21: #{tpu_custom_call.1} parent=1 // pred_fallthru
      _
    // Predicated region
    $region22: #{tpu_custom_call.1} parent=1 // pred_check
      _
    $region23: #{tpu_custom_call.1} parent=1 // pred_check_branch
      %33 = sbr.rel (0) target = $region25
    $region24: #{tpu_custom_call.1} parent=1 // pred_region
      %34 = dma.done [#allocation3], 512
    $region25: #{tpu_custom_call.1} parent=1 // pred_fallthru
      _
    %v35 = vld [vmem:[%s0] sm:$0xff]
    %v36 = vld [vmem:[#allocation2] sm:$0xff]
    %v37 = vld [vmem:[#allocation2 + $0x8] sm:$0xff]
    %v38 = vld [vmem:[#allocation2 + $0x10] sm:$0xff]
    %v39 = vld [vmem:[#allocation2 + $0x18] sm:$0xff]
    %vm40 = vcmask 261120
    %v42 = vsel %vm40, %v35, 0
    %44 = vmatprep.subr.mxu0 0.0
    %45 = vmatpush1.msra.mxu0 %v36
    %46 = vmatprep.subr.mxu0 0.0
    %47 = vmatpush1.msra.mxu0 %v37
    %48 = vmatprep.subr.mxu0 0.0
    %49 = vmatpush1.msra.mxu0 %v38
    %50 = vmatprep.subr.mxu0 0.0
    %51 = vmatpush1.msra.mxu0 %v39
    %52 = vmatprep.subr.mxu0 0.0
    %53 = vmatpush1.msra.mxu0 0.0
    %54 = vmatprep.subr.mxu0 0.0
    %55 = vmatpush1.msra.mxu0 0.0
    %56 = vmatprep.subr.mxu0 0.0
    %57 = vmatpush1.msra.mxu0 0.0
    %58 = vmatprep.subr.mxu0 0.0
    %59 = vmatpush1.msra.mxu0 0.0
    %60 = vmatprep.subr.mxu0 0.0
    %61 = vmatpush1.msra.mxu0 0.0
    %62 = vmatprep.subr.mxu0 0.0
    %63 = vmatpush1.msra.mxu0 0.0
    %64 = vmatprep.subr.mxu0 0.0
    %65 = vmatpush1.msra.mxu0 0.0
    %66 = vmatprep.subr.mxu0 0.0
    %67 = vmatpush1.msra.mxu0 0.0
    %68 = vmatprep.subr.mxu0 0.0
    %69 = vmatpush1.msra.mxu0 0.0
    %70 = vmatprep.subr.mxu0 0.0
    %71 = vmatpush1.msra.mxu0 0.0
    %72 = vmatprep.subr.mxu0 0.0
    %73 = vmatpush1.msra.mxu0 0.0
    %74 = vmatprep.subr.mxu0 0.0
    %75 = vmatpush1.msra.mxu0 0.0
    %76 = vmatprep.subr.mxu0 0.0
    %77 = vmatpush1.msra.mxu0 0.0
    %78 = vmatprep.subr.mxu0 0.0
    %79 = vmatpush1.msra.mxu0 0.0
    %80 = vmatprep.subr.mxu0 0.0
    %81 = vmatpush1.msra.mxu0 0.0
    %82 = vmatprep.subr.mxu0 0.0
    %83 = vmatpush1.msra.mxu0 0.0
    %84 = vmatprep.subr.mxu0 0.0
    %85 = vmatpush1.msra.mxu0 0.0
    %86 = vmatprep.subr.mxu0 0.0
    %87 = vmatpush1.msra.mxu0 0.0
    %88 = vmatprep.subr.mxu0 0.0
    %89 = vmatpush1.msra.mxu0 0.0
    %90 = vmatprep.subr.mxu0 0.0
    %91 = vmatpush1.msra.mxu0 0.0
    %92 = vmatprep.subr.mxu0 0.0
    %93 = vmatpush1.msra.mxu0 0.0
    %94 = vmatprep.subr.mxu0 0.0
    %95 = vmatpush1.msra.mxu0 0.0
    %96 = vmatprep.subr.mxu0 0.0
    %97 = vmatpush1.msra.mxu0 0.0
    %98 = vmatprep.subr.mxu0 0.0
    %99 = vmatpush1.msra.mxu0 0.0
    %100 = vmatprep.subr.mxu0 0.0
    %101 = vmatpush1.msra.mxu0 0.0
    %102 = vmatprep.subr.mxu0 0.0
    %103 = vmatpush1.msra.mxu0 0.0
    %104 = vmatprep.subr.mxu0 0.0
    %105 = vmatpush1.msra.mxu0 0.0
    %106 = vmatprep.subr.mxu0 0.0
    %107 = vmatpush1.msra.mxu0 0.0
    %108 = vmatprep.mubr.f32.mxu0 0.0
    %109 = vmatmul.mubr.f32.gmra.mrb[0].mxu0 %v42
    %v110 = vpop.f32.mrb[0].mxu0
    %v111 = vadd.f32 0.0, %v110
    %v112 = vpop.f32.mrb[0].mxu0
    %113 = vdwg.mxu0
    %v114 = vld [vmem:[%s4] sm:$0xff]
    %116 = vset.pattern.permute.xlu0 0
    %117 = vperm.xlu0 %116, %v114
    %v118 = vpop.permute.xlu0 %117
    %v120 = vmul.f32 %v111, %v118
    %v121 = vld [vmem:[%s2] sm:$0x1]
    %v123 = vlaneseq
    %v124 = vshrl.u32 %v123, 7
    %v125 = vsub.s32 0, %v124
    %v126 = vrot.slane %v121, %v125
    %v128 = vmul.f32 %v120, %v126
    %v129 = vmax.f32 %v128, -1.0
    %v130 = vmin.f32 %v129, 1.0
    %v131 = vld [vmem:[%s3] sm:$0xff]
    %s132 = smul.u32 0, 128
    %v133 = vstv %s132
    %v134 = vsub.s32 %v131, %v133
    %v135 = vlaneseq
    %v136 = vand.u32 %v135, 127
    %137 = vset.pattern.permute.xlu0 0
    %138 = vperm.xlu0 %137, %v134
    %v139 = vpop.permute.xlu0 %138
    %vm140 = vcmp.eq.s32.totalorder %v136, %v139
    %vm141 = vcmp.ne.s32.totalorder %v131, 4294967295
    %v142 = vsel %vm141, 1, 0
    %143 = vset.pattern.permute.xlu0 0
    %144 = vperm.xlu0 %143, %v142
    %v145 = vpop.permute.xlu0 %144
    %vm146 = vcmp.eq.s32.totalorder %v145, 1
    %vm147 = vmand %vm140, %vm146
    %v148 = vsel %vm147, %v130, 0.0
    %149 = vadd.xlane.f32.xlu0 %v148
    %v150 = vpop.xlane.xlu0 %149
    %v151 = vmul.f32 %v150, %v150
    %v152 = vsub.f32 1.0, %v151
    %v153 = vmax.f32 %v152, 0.0
    %v154 = vrsqrt.pop %v153
    %v155 = vmul.f32 %v153, %v154
    %vm156 = vcmp.eq.f32.partialorder %v153, inf
    %v157 = vsel %vm156, %v153, %v155
    %vm158 = vcmp.eq.f32.partialorder %v153, 0.0
    %v159 = vand.u32 %v153, 2147483648
    %v160 = vsel %vm158, %v159, %v157
    %v161 = vmul.f32 %v150, %v114
    %v162 = vmul.f32 %v160, %v114
    %164 = vrot.lane.b32.xlu0 %v162, 127
    %v165 = vpop.permute.xlu0 %164
    %v167 = vsub.f32 %v161, %v165
    %169 = vset.pattern.permute.xlu0 1
    %170 = vperm.xlu0 %169, %v167
    %v171 = vpop.permute.xlu0 %170
    %v173 = vsel %vm147, %v171, %v130
    %v174 = vmul.f32 %v173, 64.0
    %175 = vst [vmem:[#allocation5] sm:$0xff] %v174
    // Predicated region
    $region26: #{tpu_custom_call.1} parent=1 // pred_check
      _
    $region27: #{tpu_custom_call.1} parent=1 // pred_check_branch
      %177 = sbr.rel (0) target = $region29
    $region28: #{tpu_custom_call.1} parent=1 // pred_region
      %s179 = ssub.s32 128, 128
      %180 = vsyncadd [#allocation4], %s179
      %s182 = sshll.u32 [#allocation5], 4
      %s183 = int_to_ptr.vmem [resolvable:$true] %s182
      %185 = dma.vmem_to_hbm [thread:$0]  %s183, 128, %s5, [#allocation4]
    $region29: #{tpu_custom_call.1} parent=1 // pred_fallthru
      _
    // Predicated region
    $region30: #{tpu_custom_call.1} parent=1 // pred_check
      _
    $region31: #{tpu_custom_call.1} parent=1 // pred_check_branch
      %187 = sbr.rel (0) target = $region33
    $region32: #{tpu_custom_call.1} parent=1 // pred_region
      %188 = dma.done [#allocation4], 128
    $region33: #{tpu_custom_call.1} parent=1 // pred_fallthru
      _
    %189 = vsyncpa [#allocation3], 1
    %190 = vsyncpa [#allocation4], 1

</llo_original>
